<compile_context>
chip_gen: v6e
topology: v6e:2x2x1
jax: 0.10.0
libtpu: 0.0.40
codegen_flags: <defaults>
</compile_context>

<pallas_src>
import functools

import jax
import jax.numpy as jnp
from jax.experimental import pallas as pl
from jax.experimental.pallas import tpu as pltpu

EPS = 1e-5          # PyTorch BatchNorm1d default eps
LANE = 128          # TPU lane width

# ---- Static weight-slab layout (rows; 16-row aligned blocks, slab is 128 lanes wide)
R_L0 = 0      # rows   0.. 31 : L0 W^T (20 x 128)   (rows 20..31 zero)
R_L1A = 32    # rows  32..159 : L1 W^T[:, 0:128]    (128 x 128)
R_L1B = 160   # rows 160..287 : L1 W^T[:, 128:256]  (128 x 128)
R_L2 = 288    # rows 288..543 : L2 W^T              (256 x 128)
R_L3 = 544    # rows 544..671 : L3 W^T (128 x 64),  lanes 0:64
R_L4 = 672    # rows 672..735 : L4 W^T (64 x 32),   lanes 0:32
R_L5 = 736    # rows 736..767 : L5 W^T (32 x nc),   lanes 0:nc
W_ROWS = 768

N_BN = 6            # BN chunks: L0, L1a, L1b, L2, L3, L4
BIAS_ROW = 2 * N_BN  # row 12 of v_slab = final Linear bias
V_ROWS = 16

_LAYER_DIMS = ((20, 128), (128, 256), (256, 128), (128, 64), (64, 32))  # hidden layers
_BN_FEATURES = 128 + 256 + 128 + 64 + 32  # 608 rsqrt's (transcendental count)


# --------------------------------------------------------------------------- kernel
def _classifier_kernel(x_ref, w_ref, v_ref, out_ref):
    f32 = jnp.float32

    def wblk(r0, rows, cols):
        # Static slab slice; astype is a no-op for the default f32 slab and a
        # cheap VPU upcast if the optional bf16 slab is used.
        return w_ref[r0:r0 + rows, :cols].astype(f32)

    def bn_relu(h, idx):
        cols = h.shape[1]
        gamma = v_ref[idx:idx + 1, :cols]
        beta = v_ref[N_BN + idx:N_BN + idx + 1, :cols]
        mean = jnp.mean(h, axis=0, keepdims=True)
        d = h - mean                                   # reused for the affine below
        var = jnp.mean(d * d, axis=0, keepdims=True)   # two-pass biased variance
        scale = gamma * jax.lax.rsqrt(var + EPS)       # (1,F): EUP rsqrt + tiny mul
        return jnp.maximum(d * scale + beta, 0.0)      # fused BN affine + ReLU

    x = x_ref[...].astype(f32)                         # (B, 20) — no lane padding
    # L0: Linear(20->128) + BN + ReLU (hidden biases cancel against BN mean-sub)
    h = bn_relu(jnp.dot(x, wblk(R_L0, 20, LANE), preferred_element_type=f32), 0)
    # L1: Linear(128->256) + BN + ReLU, evaluated as two independent 128-lane halves
    ha = bn_relu(jnp.dot(h, wblk(R_L1A, 128, LANE), preferred_element_type=f32), 1)
    hb = bn_relu(jnp.dot(h, wblk(R_L1B, 128, LANE), preferred_element_type=f32), 2)
    # L2: Linear(256->128): contraction split across the two halves (exact)
    h = (jnp.dot(ha, wblk(R_L2, 128, LANE), preferred_element_type=f32) +
         jnp.dot(hb, wblk(R_L2 + 128, 128, LANE), preferred_element_type=f32))
    h = bn_relu(h, 3)
    # L3: Linear(128->64) + BN + ReLU
    h = bn_relu(jnp.dot(h, wblk(R_L3, 128, 64), preferred_element_type=f32), 4)
    # L4: Linear(64->32) + BN + ReLU
    h = bn_relu(jnp.dot(h, wblk(R_L4, 64, 32), preferred_element_type=f32), 5)
    # L5: Linear(32->num_classes) keeps its bias; 128-lane zero-padded -> dense store
    bias = v_ref[BIAS_ROW:BIAS_ROW + 1, :]
    out_ref[...] = jnp.dot(h, wblk(R_L5, 32, LANE), preferred_element_type=f32) + bias


# --------------------------------------------------------------------------- params
def init_params(key, num_classes):
    """Deterministic PyTorch-style init. Returns raw (unpadded) per-layer params."""
    dims = (20, 128, 256, 128, 64, 32, num_classes)
    n_layers = len(dims) - 1
    params = []
    for li in range(n_layers):
        fan_in, fan_out = dims[li], dims[li + 1]
        key, kw, kb = jax.random.split(key, 3)
        bound = 1.0 / jnp.sqrt(jnp.float32(fan_in))
        layer = {
            "w": jax.random.uniform(kw, (fan_out, fan_in), jnp.float32, -bound, bound),
            "b": jax.random.uniform(kb, (fan_out,), jnp.float32, -bound, bound),
        }
        if li < n_layers - 1:  # hidden layers have BatchNorm1d
            layer["gamma"] = jnp.ones((fan_out,), jnp.float32)
            layer["beta"] = jnp.zeros((fan_out,), jnp.float32)
        params.append(layer)
    return params


def pack_params(raw_params, num_classes, weights_dtype=jnp.float32):
    """Pack all params into two lane-dense slabs: W^T slab + gamma/beta/bias slab."""
    w = [p["w"] for p in raw_params]
    w_slab = jnp.zeros((W_ROWS, LANE), jnp.float32)
    w_slab = w_slab.at[R_L0:R_L0 + 20, :128].set(w[0].T)
    w_slab = w_slab.at[R_L1A:R_L1A + 128, :128].set(w[1].T[:, 0:128])
    w_slab = w_slab.at[R_L1B:R_L1B + 128, :128].set(w[1].T[:, 128:256])
    w_slab = w_slab.at[R_L2:R_L2 + 256, :128].set(w[2].T)
    w_slab = w_slab.at[R_L3:R_L3 + 128, :64].set(w[3].T)
    w_slab = w_slab.at[R_L4:R_L4 + 64, :32].set(w[4].T)
    w_slab = w_slab.at[R_L5:R_L5 + 32, :num_classes].set(w[5].T)

    v_slab = jnp.zeros((V_ROWS, LANE), jnp.float32)
    gammas = [raw_params[0]["gamma"],
              raw_params[1]["gamma"][:128], raw_params[1]["gamma"][128:],
              raw_params[2]["gamma"], raw_params[3]["gamma"], raw_params[4]["gamma"]]
    betas = [raw_params[0]["beta"],
             raw_params[1]["beta"][:128], raw_params[1]["beta"][128:],
             raw_params[2]["beta"], raw_params[3]["beta"], raw_params[4]["beta"]]
    for i, (g, b) in enumerate(zip(gammas, betas)):
        v_slab = v_slab.at[i, :g.shape[0]].set(g)
        v_slab = v_slab.at[N_BN + i, :b.shape[0]].set(b)
    v_slab = v_slab.at[BIAS_ROW, :num_classes].set(raw_params[-1]["b"])
    # Hidden-layer Linear biases are intentionally NOT packed: the BN mean
    # subtraction cancels them exactly in training-mode BatchNorm.
    return w_slab.astype(weights_dtype), v_slab


# --------------------------------------------------------------------------- wrapper
def _vmem_limit_bytes():
    """Generation-aware scoped-VMEM limit (half of physical, clamped to 32..64 MiB)."""
    try:
        phys = int(pltpu.get_tpu_info().vmem_capacity_bytes)
    except Exception:
        phys = 64 * 1024 * 1024  # conservative (v7x-sized) fallback
    return int(min(max(phys // 2, 32 * 1024 * 1024), 64 * 1024 * 1024))


@functools.partial(jax.jit, static_argnames=("num_classes",))
def classifier_net(x, w_slab, v_slab, num_classes):
    batch, in_features = x.shape
    assert in_features == 20

    flops = 2 * batch * (sum(i * o for i, o in _LAYER_DIMS) + 32 * num_classes)
    bytes_accessed = (w_slab.size * w_slab.dtype.itemsize
                      + v_slab.size * v_slab.dtype.itemsize
                      + batch * in_features * 4 + batch * LANE * 4)

    vmem = pl.BlockSpec(memory_space=pltpu.MemorySpace.VMEM)
    out_pad = pl.pallas_call(
        _classifier_kernel,
        out_shape=jax.ShapeDtypeStruct((batch, LANE), jnp.float32),
        in_specs=[vmem, vmem, vmem],
        out_specs=vmem,
        compiler_params=pltpu.CompilerParams(vmem_limit_bytes=_vmem_limit_bytes()),
        cost_estimate=pl.CostEstimate(flops=flops, transcendentals=_BN_FEATURES,
                                      bytes_accessed=bytes_accessed),
    )(x.astype(jnp.float32), w_slab, v_slab)
    return out_pad[:, :num_classes]


# --------------------------------------------------------------------------- reference
def reference_forward(x, raw_params):
    """Pure-JAX reference matching the PyTorch module exactly (incl. hidden biases)."""
    h = x.astype(jnp.float32)
    n_layers = len(raw_params)
    for li, p in enumerate(raw_params):
        h = h @ p["w"].T + p["b"]
        if li < n_layers - 1:
            mean = jnp.mean(h, axis=0, keepdims=True)
            var = jnp.mean((h - mean) ** 2, axis=0, keepdims=True)
            h = (h - mean) * jax.lax.rsqrt(var + EPS) * p["gamma"] + p["beta"]
            h = jnp.maximum(h, 0.0)
    return h


if __name__ == "__main__":
    num_classes = 10
    batch = 8

    key = jax.random.PRNGKey(0)
    key, kx = jax.random.split(key)
    x = jax.random.normal(kx, (batch, 20), jnp.float32)

    raw_params = init_params(key, num_classes)
    w_slab, v_slab = pack_params(raw_params, num_classes)  # weights_dtype=jnp.bfloat16 optional

    out = classifier_net(x, w_slab, v_slab, num_classes)
    out = jax.block_until_ready(out)

    ref = reference_forward(x, raw_params)
    assert out.shape == (batch, num_classes)
    err = float(jnp.max(jnp.abs(out - ref)))
    assert jnp.allclose(out, ref, atol=1e-4, rtol=1e-4), err
    print("KERNEL_OK")
</pallas_src>

<mosaic_0001>
module attributes {stable_mosaic.version = 11 : i64} {
  func.func @_classifier_kernel(%arg0: memref<8x20xf32, #tpu.memory_space<vmem>>, %arg1: memref<768x128xf32, #tpu.memory_space<vmem>>, %arg2: memref<16x128xf32, #tpu.memory_space<vmem>>, %arg3: memref<8x128xf32, #tpu.memory_space<vmem>>) attributes {dimension_semantics = [], scalar_prefetch = 0 : i64, scratch_operands = 0 : i64, tpu.core_type = #tpu.core_type<tc>} {
    %c0 = arith.constant 0 : index
    %c0_0 = arith.constant 0 : index
    %0 = vector.load %arg0[%c0, %c0_0] : memref<8x20xf32, #tpu.memory_space<vmem>>, vector<8x20xf32>
    %c0_1 = arith.constant 0 : index
    %c0_2 = arith.constant 0 : index
    %1 = vector.load %arg1[%c0_1, %c0_2] : memref<768x128xf32, #tpu.memory_space<vmem>>, vector<20x128xf32>
    %cst = arith.constant dense<0.000000e+00> : vector<8x128xf32>
    %2 = tpu.matmul %0, %1, %cst {dimension_numbers = #tpu.dot_dimension_numbers<[1], [0], [0], [1], [0, 0, 1, 1], [], []>} : vector<8x20xf32>, vector<20x128xf32>, vector<8x128xf32> -> vector<8x128xf32>
    %c0_3 = arith.constant 0 : index
    %c0_4 = arith.constant 0 : index
    %3 = vector.load %arg2[%c0_3, %c0_4] : memref<16x128xf32, #tpu.memory_space<vmem>>, vector<1x128xf32>
    %c6 = arith.constant 6 : index
    %c0_5 = arith.constant 0 : index
    %4 = vector.load %arg2[%c6, %c0_5] : memref<16x128xf32, #tpu.memory_space<vmem>>, vector<1x128xf32>
    %cst_6 = arith.constant dense<0.000000e+00> : vector<128xf32>
    %5 = vector.multi_reduction <add>, %2, %cst_6 [0] : vector<8x128xf32> to vector<128xf32>
    %6 = vector.shape_cast %5 : vector<128xf32> to vector<1x128xf32>
    %cst_7 = arith.constant 8.000000e+00 : f32
    %7 = vector.broadcast %cst_7 : f32 to vector<1x128xf32>
    %8 = arith.divf %6, %7 : vector<1x128xf32>
    %9 = vector.broadcast %8 : vector<1x128xf32> to vector<8x128xf32>
    %10 = arith.subf %2, %9 : vector<8x128xf32>
    %11 = arith.mulf %10, %10 : vector<8x128xf32>
    %cst_8 = arith.constant dense<0.000000e+00> : vector<128xf32>
    %12 = vector.multi_reduction <add>, %11, %cst_8 [0] : vector<8x128xf32> to vector<128xf32>
    %13 = vector.shape_cast %12 : vector<128xf32> to vector<1x128xf32>
    %cst_9 = arith.constant 8.000000e+00 : f32
    %14 = vector.broadcast %cst_9 : f32 to vector<1x128xf32>
    %15 = arith.divf %13, %14 : vector<1x128xf32>
    %cst_10 = arith.constant 9.99999974E-6 : f32
    %16 = vector.broadcast %cst_10 : f32 to vector<1x128xf32>
    %17 = arith.addf %15, %16 : vector<1x128xf32>
    %18 = math.rsqrt %17 : vector<1x128xf32>
    %19 = arith.mulf %3, %18 : vector<1x128xf32>
    %20 = vector.broadcast %19 : vector<1x128xf32> to vector<8x128xf32>
    %21 = arith.mulf %10, %20 : vector<8x128xf32>
    %22 = vector.broadcast %4 : vector<1x128xf32> to vector<8x128xf32>
    %23 = arith.addf %21, %22 : vector<8x128xf32>
    %cst_11 = arith.constant 0.000000e+00 : f32
    %24 = vector.broadcast %cst_11 : f32 to vector<8x128xf32>
    %25 = arith.maximumf %23, %24 : vector<8x128xf32>
    %c32 = arith.constant 32 : index
    %c0_12 = arith.constant 0 : index
    %26 = vector.load %arg1[%c32, %c0_12] : memref<768x128xf32, #tpu.memory_space<vmem>>, vector<128x128xf32>
    %cst_13 = arith.constant dense<0.000000e+00> : vector<8x128xf32>
    %27 = tpu.matmul %25, %26, %cst_13 {dimension_numbers = #tpu.dot_dimension_numbers<[1], [0], [0], [1], [0, 0, 1, 1], [], []>} : vector<8x128xf32>, vector<128x128xf32>, vector<8x128xf32> -> vector<8x128xf32>
    %c1 = arith.constant 1 : index
    %c0_14 = arith.constant 0 : index
    %28 = vector.load %arg2[%c1, %c0_14] : memref<16x128xf32, #tpu.memory_space<vmem>>, vector<1x128xf32>
    %c7 = arith.constant 7 : index
    %c0_15 = arith.constant 0 : index
    %29 = vector.load %arg2[%c7, %c0_15] : memref<16x128xf32, #tpu.memory_space<vmem>>, vector<1x128xf32>
    %cst_16 = arith.constant dense<0.000000e+00> : vector<128xf32>
    %30 = vector.multi_reduction <add>, %27, %cst_16 [0] : vector<8x128xf32> to vector<128xf32>
    %31 = vector.shape_cast %30 : vector<128xf32> to vector<1x128xf32>
    %cst_17 = arith.constant 8.000000e+00 : f32
    %32 = vector.broadcast %cst_17 : f32 to vector<1x128xf32>
    %33 = arith.divf %31, %32 : vector<1x128xf32>
    %34 = vector.broadcast %33 : vector<1x128xf32> to vector<8x128xf32>
    %35 = arith.subf %27, %34 : vector<8x128xf32>
    %36 = arith.mulf %35, %35 : vector<8x128xf32>
    %cst_18 = arith.constant dense<0.000000e+00> : vector<128xf32>
    %37 = vector.multi_reduction <add>, %36, %cst_18 [0] : vector<8x128xf32> to vector<128xf32>
    %38 = vector.shape_cast %37 : vector<128xf32> to vector<1x128xf32>
    %cst_19 = arith.constant 8.000000e+00 : f32
    %39 = vector.broadcast %cst_19 : f32 to vector<1x128xf32>
    %40 = arith.divf %38, %39 : vector<1x128xf32>
    %cst_20 = arith.constant 9.99999974E-6 : f32
    %41 = vector.broadcast %cst_20 : f32 to vector<1x128xf32>
    %42 = arith.addf %40, %41 : vector<1x128xf32>
    %43 = math.rsqrt %42 : vector<1x128xf32>
    %44 = arith.mulf %28, %43 : vector<1x128xf32>
    %45 = vector.broadcast %44 : vector<1x128xf32> to vector<8x128xf32>
    %46 = arith.mulf %35, %45 : vector<8x128xf32>
    %47 = vector.broadcast %29 : vector<1x128xf32> to vector<8x128xf32>
    %48 = arith.addf %46, %47 : vector<8x128xf32>
    %cst_21 = arith.constant 0.000000e+00 : f32
    %49 = vector.broadcast %cst_21 : f32 to vector<8x128xf32>
    %50 = arith.maximumf %48, %49 : vector<8x128xf32>
    %c160 = arith.constant 160 : index
    %c0_22 = arith.constant 0 : index
    %51 = vector.load %arg1[%c160, %c0_22] : memref<768x128xf32, #tpu.memory_space<vmem>>, vector<128x128xf32>
    %cst_23 = arith.constant dense<0.000000e+00> : vector<8x128xf32>
    %52 = tpu.matmul %25, %51, %cst_23 {dimension_numbers = #tpu.dot_dimension_numbers<[1], [0], [0], [1], [0, 0, 1, 1], [], []>} : vector<8x128xf32>, vector<128x128xf32>, vector<8x128xf32> -> vector<8x128xf32>
    %c2 = arith.constant 2 : index
    %c0_24 = arith.constant 0 : index
    %53 = vector.load %arg2[%c2, %c0_24] : memref<16x128xf32, #tpu.memory_space<vmem>>, vector<1x128xf32>
    %c8 = arith.constant 8 : index
    %c0_25 = arith.constant 0 : index
    %54 = vector.load %arg2[%c8, %c0_25] : memref<16x128xf32, #tpu.memory_space<vmem>>, vector<1x128xf32>
    %cst_26 = arith.constant dense<0.000000e+00> : vector<128xf32>
    %55 = vector.multi_reduction <add>, %52, %cst_26 [0] : vector<8x128xf32> to vector<128xf32>
    %56 = vector.shape_cast %55 : vector<128xf32> to vector<1x128xf32>
    %cst_27 = arith.constant 8.000000e+00 : f32
    %57 = vector.broadcast %cst_27 : f32 to vector<1x128xf32>
    %58 = arith.divf %56, %57 : vector<1x128xf32>
    %59 = vector.broadcast %58 : vector<1x128xf32> to vector<8x128xf32>
    %60 = arith.subf %52, %59 : vector<8x128xf32>
    %61 = arith.mulf %60, %60 : vector<8x128xf32>
    %cst_28 = arith.constant dense<0.000000e+00> : vector<128xf32>
    %62 = vector.multi_reduction <add>, %61, %cst_28 [0] : vector<8x128xf32> to vector<128xf32>
    %63 = vector.shape_cast %62 : vector<128xf32> to vector<1x128xf32>
    %cst_29 = arith.constant 8.000000e+00 : f32
    %64 = vector.broadcast %cst_29 : f32 to vector<1x128xf32>
    %65 = arith.divf %63, %64 : vector<1x128xf32>
    %cst_30 = arith.constant 9.99999974E-6 : f32
    %66 = vector.broadcast %cst_30 : f32 to vector<1x128xf32>
    %67 = arith.addf %65, %66 : vector<1x128xf32>
    %68 = math.rsqrt %67 : vector<1x128xf32>
    %69 = arith.mulf %53, %68 : vector<1x128xf32>
    %70 = vector.broadcast %69 : vector<1x128xf32> to vector<8x128xf32>
    %71 = arith.mulf %60, %70 : vector<8x128xf32>
    %72 = vector.broadcast %54 : vector<1x128xf32> to vector<8x128xf32>
    %73 = arith.addf %71, %72 : vector<8x128xf32>
    %cst_31 = arith.constant 0.000000e+00 : f32
    %74 = vector.broadcast %cst_31 : f32 to vector<8x128xf32>
    %75 = arith.maximumf %73, %74 : vector<8x128xf32>
    %c288 = arith.constant 288 : index
    %c0_32 = arith.constant 0 : index
    %76 = vector.load %arg1[%c288, %c0_32] : memref<768x128xf32, #tpu.memory_space<vmem>>, vector<128x128xf32>
    %cst_33 = arith.constant dense<0.000000e+00> : vector<8x128xf32>
    %77 = tpu.matmul %50, %76, %cst_33 {dimension_numbers = #tpu.dot_dimension_numbers<[1], [0], [0], [1], [0, 0, 1, 1], [], []>} : vector<8x128xf32>, vector<128x128xf32>, vector<8x128xf32> -> vector<8x128xf32>
    %c416 = arith.constant 416 : index
    %c0_34 = arith.constant 0 : index
    %78 = vector.load %arg1[%c416, %c0_34] : memref<768x128xf32, #tpu.memory_space<vmem>>, vector<128x128xf32>
    %cst_35 = arith.constant dense<0.000000e+00> : vector<8x128xf32>
    %79 = tpu.matmul %75, %78, %cst_35 {dimension_numbers = #tpu.dot_dimension_numbers<[1], [0], [0], [1], [0, 0, 1, 1], [], []>} : vector<8x128xf32>, vector<128x128xf32>, vector<8x128xf32> -> vector<8x128xf32>
    %80 = arith.addf %77, %79 : vector<8x128xf32>
    %c3 = arith.constant 3 : index
    %c0_36 = arith.constant 0 : index
    %81 = vector.load %arg2[%c3, %c0_36] : memref<16x128xf32, #tpu.memory_space<vmem>>, vector<1x128xf32>
    %c9 = arith.constant 9 : index
    %c0_37 = arith.constant 0 : index
    %82 = vector.load %arg2[%c9, %c0_37] : memref<16x128xf32, #tpu.memory_space<vmem>>, vector<1x128xf32>
    %cst_38 = arith.constant dense<0.000000e+00> : vector<128xf32>
    %83 = vector.multi_reduction <add>, %80, %cst_38 [0] : vector<8x128xf32> to vector<128xf32>
    %84 = vector.shape_cast %83 : vector<128xf32> to vector<1x128xf32>
    %cst_39 = arith.constant 8.000000e+00 : f32
    %85 = vector.broadcast %cst_39 : f32 to vector<1x128xf32>
    %86 = arith.divf %84, %85 : vector<1x128xf32>
    %87 = vector.broadcast %86 : vector<1x128xf32> to vector<8x128xf32>
    %88 = arith.subf %80, %87 : vector<8x128xf32>
    %89 = arith.mulf %88, %88 : vector<8x128xf32>
    %cst_40 = arith.constant dense<0.000000e+00> : vector<128xf32>
    %90 = vector.multi_reduction <add>, %89, %cst_40 [0] : vector<8x128xf32> to vector<128xf32>
    %91 = vector.shape_cast %90 : vector<128xf32> to vector<1x128xf32>
    %cst_41 = arith.constant 8.000000e+00 : f32
    %92 = vector.broadcast %cst_41 : f32 to vector<1x128xf32>
    %93 = arith.divf %91, %92 : vector<1x128xf32>
    %cst_42 = arith.constant 9.99999974E-6 : f32
    %94 = vector.broadcast %cst_42 : f32 to vector<1x128xf32>
    %95 = arith.addf %93, %94 : vector<1x128xf32>
    %96 = math.rsqrt %95 : vector<1x128xf32>
    %97 = arith.mulf %81, %96 : vector<1x128xf32>
    %98 = vector.broadcast %97 : vector<1x128xf32> to vector<8x128xf32>
    %99 = arith.mulf %88, %98 : vector<8x128xf32>
    %100 = vector.broadcast %82 : vector<1x128xf32> to vector<8x128xf32>
    %101 = arith.addf %99, %100 : vector<8x128xf32>
    %cst_43 = arith.constant 0.000000e+00 : f32
    %102 = vector.broadcast %cst_43 : f32 to vector<8x128xf32>
    %103 = arith.maximumf %101, %102 : vector<8x128xf32>
    %c544 = arith.constant 544 : index
    %c0_44 = arith.constant 0 : index
    %104 = vector.load %arg1[%c544, %c0_44] : memref<768x128xf32, #tpu.memory_space<vmem>>, vector<128x64xf32>
    %cst_45 = arith.constant dense<0.000000e+00> : vector<8x64xf32>
    %105 = tpu.matmul %103, %104, %cst_45 {dimension_numbers = #tpu.dot_dimension_numbers<[1], [0], [0], [1], [0, 0, 1, 1], [], []>} : vector<8x128xf32>, vector<128x64xf32>, vector<8x64xf32> -> vector<8x64xf32>
    %c4 = arith.constant 4 : index
    %c0_46 = arith.constant 0 : index
    %106 = vector.load %arg2[%c4, %c0_46] : memref<16x128xf32, #tpu.memory_space<vmem>>, vector<1x64xf32>
    %c10 = arith.constant 10 : index
    %c0_47 = arith.constant 0 : index
    %107 = vector.load %arg2[%c10, %c0_47] : memref<16x128xf32, #tpu.memory_space<vmem>>, vector<1x64xf32>
    %cst_48 = arith.constant dense<0.000000e+00> : vector<64xf32>
    %108 = vector.multi_reduction <add>, %105, %cst_48 [0] : vector<8x64xf32> to vector<64xf32>
    %109 = vector.shape_cast %108 : vector<64xf32> to vector<1x64xf32>
    %cst_49 = arith.constant 8.000000e+00 : f32
    %110 = vector.broadcast %cst_49 : f32 to vector<1x64xf32>
    %111 = arith.divf %109, %110 : vector<1x64xf32>
    %112 = vector.broadcast %111 : vector<1x64xf32> to vector<8x64xf32>
    %113 = arith.subf %105, %112 : vector<8x64xf32>
    %114 = arith.mulf %113, %113 : vector<8x64xf32>
    %cst_50 = arith.constant dense<0.000000e+00> : vector<64xf32>
    %115 = vector.multi_reduction <add>, %114, %cst_50 [0] : vector<8x64xf32> to vector<64xf32>
    %116 = vector.shape_cast %115 : vector<64xf32> to vector<1x64xf32>
    %cst_51 = arith.constant 8.000000e+00 : f32
    %117 = vector.broadcast %cst_51 : f32 to vector<1x64xf32>
    %118 = arith.divf %116, %117 : vector<1x64xf32>
    %cst_52 = arith.constant 9.99999974E-6 : f32
    %119 = vector.broadcast %cst_52 : f32 to vector<1x64xf32>
    %120 = arith.addf %118, %119 : vector<1x64xf32>
    %121 = math.rsqrt %120 : vector<1x64xf32>
    %122 = arith.mulf %106, %121 : vector<1x64xf32>
    %123 = vector.broadcast %122 : vector<1x64xf32> to vector<8x64xf32>
    %124 = arith.mulf %113, %123 : vector<8x64xf32>
    %125 = vector.broadcast %107 : vector<1x64xf32> to vector<8x64xf32>
    %126 = arith.addf %124, %125 : vector<8x64xf32>
    %cst_53 = arith.constant 0.000000e+00 : f32
    %127 = vector.broadcast %cst_53 : f32 to vector<8x64xf32>
    %128 = arith.maximumf %126, %127 : vector<8x64xf32>
    %c672 = arith.constant 672 : index
    %c0_54 = arith.constant 0 : index
    %129 = vector.load %arg1[%c672, %c0_54] : memref<768x128xf32, #tpu.memory_space<vmem>>, vector<64x32xf32>
    %cst_55 = arith.constant dense<0.000000e+00> : vector<8x32xf32>
    %130 = tpu.matmul %128, %129, %cst_55 {dimension_numbers = #tpu.dot_dimension_numbers<[1], [0], [0], [1], [0, 0, 1, 1], [], []>} : vector<8x64xf32>, vector<64x32xf32>, vector<8x32xf32> -> vector<8x32xf32>
    %c5 = arith.constant 5 : index
    %c0_56 = arith.constant 0 : index
    %131 = vector.load %arg2[%c5, %c0_56] : memref<16x128xf32, #tpu.memory_space<vmem>>, vector<1x32xf32>
    %c11 = arith.constant 11 : index
    %c0_57 = arith.constant 0 : index
    %132 = vector.load %arg2[%c11, %c0_57] : memref<16x128xf32, #tpu.memory_space<vmem>>, vector<1x32xf32>
    %cst_58 = arith.constant dense<0.000000e+00> : vector<32xf32>
    %133 = vector.multi_reduction <add>, %130, %cst_58 [0] : vector<8x32xf32> to vector<32xf32>
    %134 = vector.shape_cast %133 : vector<32xf32> to vector<1x32xf32>
    %cst_59 = arith.constant 8.000000e+00 : f32
    %135 = vector.broadcast %cst_59 : f32 to vector<1x32xf32>
    %136 = arith.divf %134, %135 : vector<1x32xf32>
    %137 = vector.broadcast %136 : vector<1x32xf32> to vector<8x32xf32>
    %138 = arith.subf %130, %137 : vector<8x32xf32>
    %139 = arith.mulf %138, %138 : vector<8x32xf32>
    %cst_60 = arith.constant dense<0.000000e+00> : vector<32xf32>
    %140 = vector.multi_reduction <add>, %139, %cst_60 [0] : vector<8x32xf32> to vector<32xf32>
    %141 = vector.shape_cast %140 : vector<32xf32> to vector<1x32xf32>
    %cst_61 = arith.constant 8.000000e+00 : f32
    %142 = vector.broadcast %cst_61 : f32 to vector<1x32xf32>
    %143 = arith.divf %141, %142 : vector<1x32xf32>
    %cst_62 = arith.constant 9.99999974E-6 : f32
    %144 = vector.broadcast %cst_62 : f32 to vector<1x32xf32>
    %145 = arith.addf %143, %144 : vector<1x32xf32>
    %146 = math.rsqrt %145 : vector<1x32xf32>
    %147 = arith.mulf %131, %146 : vector<1x32xf32>
    %148 = vector.broadcast %147 : vector<1x32xf32> to vector<8x32xf32>
    %149 = arith.mulf %138, %148 : vector<8x32xf32>
    %150 = vector.broadcast %132 : vector<1x32xf32> to vector<8x32xf32>
    %151 = arith.addf %149, %150 : vector<8x32xf32>
    %cst_63 = arith.constant 0.000000e+00 : f32
    %152 = vector.broadcast %cst_63 : f32 to vector<8x32xf32>
    %153 = arith.maximumf %151, %152 : vector<8x32xf32>
    %c12 = arith.constant 12 : index
    %c0_64 = arith.constant 0 : index
    %154 = vector.load %arg2[%c12, %c0_64] : memref<16x128xf32, #tpu.memory_space<vmem>>, vector<1x128xf32>
    %c736 = arith.constant 736 : index
    %c0_65 = arith.constant 0 : index
    %155 = vector.load %arg1[%c736, %c0_65] : memref<768x128xf32, #tpu.memory_space<vmem>>, vector<32x128xf32>
    %cst_66 = arith.constant dense<0.000000e+00> : vector<8x128xf32>
    %156 = tpu.matmul %153, %155, %cst_66 {dimension_numbers = #tpu.dot_dimension_numbers<[1], [0], [0], [1], [0, 0, 1, 1], [], []>} : vector<8x32xf32>, vector<32x128xf32>, vector<8x128xf32> -> vector<8x128xf32>
    %157 = vector.broadcast %154 : vector<1x128xf32> to vector<8x128xf32>
    %158 = arith.addf %156, %157 : vector<8x128xf32>
    %c0_67 = arith.constant 0 : index
    %c0_68 = arith.constant 0 : index
    %159 = vector.load %arg3[%c0_67, %c0_68] : memref<8x128xf32, #tpu.memory_space<vmem>>, vector<8x128xf32>
    tpu.vector_store %arg3[%c0_67, %c0_68], %158 {strides = array<i32>} : memref<8x128xf32, #tpu.memory_space<vmem>>, vector<8x128xf32>,
    return
  }
}

</mosaic_0001>

<llo_original>
// kernel: classifier_net.1
$region0: #{classifier_net.1}
  #allocation0 [shape = 'u32[]', space=smem, size = 0x4, offset = 0x4, fixed_abs, tag = 'smem constant byte address 0x4 - core index']
  #allocation1 [shape = 'u32[144,128]{1,0:T(1,128)}', space=vmem, size = 0x12000, scoped, tag = 'internal scratch']
  %s0 = inlined_call_operand.hbm [shape: f32[8,20], index: 0, kind: input, shape index: {}]
  %s1 = inlined_call_operand.hbm [shape: f32[768,128], index: 1, kind: input, shape index: {}]
  %s2 = inlined_call_operand.hbm [shape: f32[16,128], index: 2, kind: input, shape index: {}]
  %s3 = inlined_call_operand.hbm [shape: f32[8,128], index: 3, kind: output, shape index: {}]
  %s4 = sld [smem:[#allocation0]]
  $region34: #{classifier_net.1} parent=0
    _
  %s6 = ssub.s32 1, %s4
  %s7 = scalar_select 0, %s6, %s4
  $region1: #{classifier_net.1} parent=0
    #allocation2 [shape = 'u8[4096]{0}', space=vmem, size = 0x1000, scoped, tag = 'input window, operand 0, single buffered']
    #allocation3 [shape = 's32[1]{0}', space=sflag, size = 0x4, scoped, tag = 'scoped memory for classifier_net.1']
    #allocation4 [shape = 's32[1]{0}', space=sflag, size = 0x4, scoped, tag = 'scoped memory for classifier_net.1']
    #allocation5 [shape = 'u8[393216]{0}', space=vmem, size = 0x60000, scoped, tag = 'input window, operand 1, single buffered']
    #allocation6 [shape = 's32[1]{0}', space=sflag, size = 0x4, scoped, tag = 'scoped memory for classifier_net.1']
    #allocation7 [shape = 'u8[8192]{0}', space=vmem, size = 0x2000, scoped, tag = 'input window, operand 2, single buffered']
    #allocation8 [shape = 'u8[4096]{0}', space=vmem, size = 0x1000, scoped, tag = 'output window, operand 0, single buffered']
    %8 = vsyncpa [#allocation3], 0
    %9 = vsyncpa [#allocation6], 0
    %10 = vsyncpa [#allocation4], 0
    // Predicated region
    $region2: #{classifier_net.1} parent=1 // pred_check
      _
    $region3: #{classifier_net.1} parent=1 // pred_check_branch
      %12 = sbr.rel (0) target = $region5
    $region4: #{classifier_net.1} parent=1 // pred_region
      %s14 = ssub.s32 128, 128
      %15 = vsyncadd [#allocation3], %s14
      %s17 = sshll.u32 [#allocation2], 4
      %s18 = int_to_ptr.vmem [resolvable:$true] %s17
      %20 = dma.hbm_to_vmem [thread:$0]  %s0, 128, %s18, [#allocation3]
    $region5: #{classifier_net.1} parent=1 // pred_fallthru
      _
    // Predicated region
    $region6: #{classifier_net.1} parent=1 // pred_check
      _
    $region7: #{classifier_net.1} parent=1 // pred_check_branch
      %22 = sbr.rel (0) target = $region9
    $region8: #{classifier_net.1} parent=1 // pred_region
      %s24 = ssub.s32 12288, 12288
      %25 = vsyncadd [#allocation6], %s24
      %s26 = sshll.u32 [#allocation5], 4
      %s27 = int_to_ptr.vmem [resolvable:$true] %s26
      %32 = dma.hbm_to_vmem [thread:$0]  %s1, 12288, %s27, [#allocation6], 128, 128, 8
    $region9: #{classifier_net.1} parent=1 // pred_fallthru
      _
    // Predicated region
    $region10: #{classifier_net.1} parent=1 // pred_check
      _
    $region11: #{classifier_net.1} parent=1 // pred_check_branch
      %34 = sbr.rel (0) target = $region13
    $region12: #{classifier_net.1} parent=1 // pred_region
      %s36 = ssub.s32 256, 256
      %37 = vsyncadd [#allocation6], %s36
      %s38 = sshll.u32 [#allocation7], 4
      %s39 = int_to_ptr.vmem [resolvable:$true] %s38
      %44 = dma.hbm_to_vmem [thread:$0]  %s2, 256, %s39, [#allocation6], 128, 128, 8
    $region13: #{classifier_net.1} parent=1 // pred_fallthru
      _
    // Predicated region
    $region14: #{classifier_net.1} parent=1 // pred_check
      _
    $region15: #{classifier_net.1} parent=1 // pred_check_branch
      %46 = sbr.rel (0) target = $region17
    $region16: #{classifier_net.1} parent=1 // pred_region
      %47 = dma.done [#allocation3], 128
    $region17: #{classifier_net.1} parent=1 // pred_fallthru
      _
    // Predicated region
    $region18: #{classifier_net.1} parent=1 // pred_check
      _
    $region19: #{classifier_net.1} parent=1 // pred_check_branch
      %49 = sbr.rel (0) target = $region21
    $region20: #{classifier_net.1} parent=1 // pred_region
      %50 = dma.done [#allocation6], 12288
    $region21: #{classifier_net.1} parent=1 // pred_fallthru
      _
    // Predicated region
    $region22: #{classifier_net.1} parent=1 // pred_check
      _
    $region23: #{classifier_net.1} parent=1 // pred_check_branch
      %52 = sbr.rel (0) target = $region25
    $region24: #{classifier_net.1} parent=1 // pred_region
      %53 = dma.done [#allocation6], 256
    $region25: #{classifier_net.1} parent=1 // pred_fallthru
      _
    %v54 = vld [vmem:[#allocation2] sm:$0xff]
    %v55 = vld [vmem:[#allocation5] sm:$0xff]
    %v56 = vld [vmem:[#allocation5 + $0x8] sm:$0xff]
    %v57 = vld [vmem:[#allocation5 + $0x10] sm:$0xf]
    %vm58 = vcmask 162816
    %v60 = vsel %vm58, %v54, 0
    %vm62 = vcmask 1043456
    %v64 = vsel %vm62, %v57, 0
    %66 = vmatprep.subr.mxu0 0.0
    %67 = vmatpush1.msra.mxu0 0.0
    %68 = vmatprep.subr.mxu0 0.0
    %69 = vmatpush1.msra.mxu0 0.0
    %70 = vmatprep.subr.mxu0 0.0
    %71 = vmatpush1.msra.mxu0 0.0
    %72 = vmatprep.subr.mxu0 0.0
    %73 = vmatpush1.msra.mxu0 0.0
    %74 = vmatprep.subr.mxu0 0.0
    %75 = vmatpush1.msra.mxu0 0.0
    %76 = vmatprep.subr.mxu0 0.0
    %77 = vmatpush1.msra.mxu0 0.0
    %78 = vmatprep.subr.mxu0 0.0
    %79 = vmatpush1.msra.mxu0 0.0
    %80 = vmatprep.subr.mxu0 0.0
    %81 = vmatpush1.msra.mxu0 0.0
    %82 = vmatprep.subr.mxu0 0.0
    %83 = vmatpush1.msra.mxu0 0.0
    %84 = vmatprep.subr.mxu0 0.0
    %85 = vmatpush1.msra.mxu0 0.0
    %86 = vmatprep.subr.mxu0 0.0
    %87 = vmatpush1.msra.mxu0 0.0
    %88 = vmatprep.subr.mxu0 0.0
    %89 = vmatpush1.msra.mxu0 0.0
    %90 = vmatprep.subr.mxu0 0.0
    %91 = vmatpush1.msra.mxu0 0.0
    %92 = vmatprep.subr.mxu0 0.0
    %93 = vmatpush1.msra.mxu0 %v64
    %94 = vmatprep.subr.mxu0 0.0
    %95 = vmatpush1.msra.mxu0 %v56
    %96 = vmatprep.subr.mxu0 0.0
    %97 = vmatpush1.msra.mxu0 %v55
    %98 = vmatprep.subr.mxu0 0.0
    %99 = vmatpush2.msra.mxu0 0.0
    %100 = vmatprep.subr.mxu0 0.0
    %101 = vmatpush2.msra.mxu0 0.0
    %102 = vmatprep.subr.mxu0 0.0
    %103 = vmatpush2.msra.mxu0 0.0
    %104 = vmatprep.subr.mxu0 0.0
    %105 = vmatpush2.msra.mxu0 0.0
    %106 = vmatprep.subr.mxu0 0.0
    %107 = vmatpush2.msra.mxu0 0.0
    %108 = vmatprep.subr.mxu0 0.0
    %109 = vmatpush2.msra.mxu0 0.0
    %110 = vmatprep.subr.mxu0 0.0
    %111 = vmatpush2.msra.mxu0 0.0
    %112 = vmatprep.subr.mxu0 0.0
    %113 = vmatpush2.msra.mxu0 0.0
    %114 = vmatprep.subr.mxu0 0.0
    %115 = vmatpush2.msra.mxu0 0.0
    %116 = vmatprep.subr.mxu0 0.0
    %117 = vmatpush2.msra.mxu0 0.0
    %118 = vmatprep.subr.mxu0 0.0
    %119 = vmatpush2.msra.mxu0 0.0
    %120 = vmatprep.subr.mxu0 0.0
    %121 = vmatpush2.msra.mxu0 0.0
    %122 = vmatprep.subr.mxu0 0.0
    %123 = vmatpush2.msra.mxu0 0.0
    %124 = vmatprep.subr.mxu0 0.0
    %125 = vmatpush2.msra.mxu0 0.0
    %126 = vmatprep.subr.mxu0 0.0
    %127 = vmatpush2.msra.mxu0 0.0
    %128 = vmatprep.subr.mxu0 0.0
    %129 = vmatpush2.msra.mxu0 0.0
    %130 = vmatprep.mubr.f32.mxu0 0.0
    %131 = vmatmul.mubr.f32.gmra.mxu0 %v60
    %v132 = vpop.f32.mrf.mxu0
    %v133 = vadd.f32 0.0, %v132
    %v134 = vpop.f32.mrf.mxu0
    %135 = vdwg.mxu0
    %v136 = vld [vmem:[#allocation7] sm:$0x1]
    %v137 = vld [vmem:[#allocation7 + $0x6] sm:$0x1]
    %v138 = vrot.slane %v133, 4
    %v139 = vadd.f32 %v133, %v138
    %v140 = vrot.slane %v139, 2
    %v141 = vadd.f32 %v139, %v140
    %v142 = vrot.slane %v141, 1
    %v143 = vadd.f32 %v141, %v142
    %v144 = vrcp.pop 8.0
    %v145 = vmul.f32 %v143, %v144
    %v146 = vsub.f32 %v133, %v145
    %v147 = vmul.f32 %v146, %v146
    %v148 = vrot.slane %v147, 4
    %v149 = vadd.f32 %v147, %v148
    %v150 = vrot.slane %v149, 2
    %v151 = vadd.f32 %v149, %v150
    %v152 = vrot.slane %v151, 1
    %v153 = vadd.f32 %v151, %v152
    %v154 = vmul.f32 %v153, %v144
    %v155 = vadd.f32 %v154, 1e-05
    %v156 = vrsqrt.pop %v155
    %v157 = vmul.f32 %v136, %v156
    %v158 = vlaneseq
    %v159 = vshrl.u32 %v158, 7
    %v160 = vsub.s32 0, %v159
    %v161 = vrot.slane %v157, %v160
    %v162 = vmul.f32 %v146, %v161
    %v163 = vlaneseq
    %v164 = vshrl.u32 %v163, 7
    %v165 = vsub.s32 0, %v164
    %v166 = vrot.slane %v137, %v165
    %v167 = vadd.f32 %v162, %v166
    %v168 = vmax.f32 %v167, 0.0
    %v169 = vld [vmem:[#allocation5 + $0x20] sm:$0xff]
    %v170 = vld [vmem:[#allocation5 + $0x28] sm:$0xff]
    %v171 = vld [vmem:[#allocation5 + $0x30] sm:$0xff]
    %v172 = vld [vmem:[#allocation5 + $0x38] sm:$0xff]
    %v173 = vld [vmem:[#allocation5 + $0x40] sm:$0xff]
    %v174 = vld [vmem:[#allocation5 + $0x48] sm:$0xff]
    %v175 = vld [vmem:[#allocation5 + $0x50] sm:$0xff]
    %v176 = vld [vmem:[#allocation5 + $0x58] sm:$0xff]
    %v177 = vld [vmem:[#allocation5 + $0x60] sm:$0xff]
    %v178 = vld [vmem:[#allocation5 + $0x68] sm:$0xff]
    %v179 = vld [vmem:[#allocation5 + $0x70] sm:$0xff]
    %v180 = vld [vmem:[#allocation5 + $0x78] sm:$0xff]
    %v181 = vld [vmem:[#allocation5 + $0x80] sm:$0xff]
    %v182 = vld [vmem:[#allocation5 + $0x88] sm:$0xff]
    %v183 = vld [vmem:[#allocation5 + $0x90] sm:$0xff]
    %v184 = vld [vmem:[#allocation5 + $0x98] sm:$0xff]
    %185 = vmatprep.subr.mxu0 0.0
    %186 = vmatpush1.msra.mxu0 %v184
    %187 = vmatprep.subr.mxu0 0.0
    %188 = vmatpush1.msra.mxu0 %v183
    %189 = vmatprep.subr.mxu0 0.0
    %190 = vmatpush1.msra.mxu0 %v182
    %191 = vmatprep.subr.mxu0 0.0
    %192 = vmatpush1.msra.mxu0 %v181
    %193 = vmatprep.subr.mxu0 0.0
    %194 = vmatpush1.msra.mxu0 %v180
    %195 = vmatprep.subr.mxu0 0.0
    %196 = vmatpush1.msra.mxu0 %v179
    %197 = vmatprep.subr.mxu0 0.0
    %198 = vmatpush1.msra.mxu0 %v178
    %199 = vmatprep.subr.mxu0 0.0
    %200 = vmatpush1.msra.mxu0 %v177
    %201 = vmatprep.subr.mxu0 0.0
    %202 = vmatpush1.msra.mxu0 %v176
    %203 = vmatprep.subr.mxu0 0.0
    %204 = vmatpush1.msra.mxu0 %v175
    %205 = vmatprep.subr.mxu0 0.0
    %206 = vmatpush1.msra.mxu0 %v174
    %207 = vmatprep.subr.mxu0 0.0
    %208 = vmatpush1.msra.mxu0 %v173
    %209 = vmatprep.subr.mxu0 0.0
    %210 = vmatpush1.msra.mxu0 %v172
    %211 = vmatprep.subr.mxu0 0.0
    %212 = vmatpush1.msra.mxu0 %v171
    %213 = vmatprep.subr.mxu0 0.0
    %214 = vmatpush1.msra.mxu0 %v170
    %215 = vmatprep.subr.mxu0 0.0
    %216 = vmatpush1.msra.mxu0 %v169
    %217 = vmatprep.subr.mxu0 0.0
    %218 = vmatpush2.msra.mxu0 0.0
    %219 = vmatprep.subr.mxu0 0.0
    %220 = vmatpush2.msra.mxu0 0.0
    %221 = vmatprep.subr.mxu0 0.0
    %222 = vmatpush2.msra.mxu0 0.0
    %223 = vmatprep.subr.mxu0 0.0
    %224 = vmatpush2.msra.mxu0 0.0
    %225 = vmatprep.subr.mxu0 0.0
    %226 = vmatpush2.msra.mxu0 0.0
    %227 = vmatprep.subr.mxu0 0.0
    %228 = vmatpush2.msra.mxu0 0.0
    %229 = vmatprep.subr.mxu0 0.0
    %230 = vmatpush2.msra.mxu0 0.0
    %231 = vmatprep.subr.mxu0 0.0
    %232 = vmatpush2.msra.mxu0 0.0
    %233 = vmatprep.subr.mxu0 0.0
    %234 = vmatpush2.msra.mxu0 0.0
    %235 = vmatprep.subr.mxu0 0.0
    %236 = vmatpush2.msra.mxu0 0.0
    %237 = vmatprep.subr.mxu0 0.0
    %238 = vmatpush2.msra.mxu0 0.0
    %239 = vmatprep.subr.mxu0 0.0
    %240 = vmatpush2.msra.mxu0 0.0
    %241 = vmatprep.subr.mxu0 0.0
    %242 = vmatpush2.msra.mxu0 0.0
    %243 = vmatprep.subr.mxu0 0.0
    %244 = vmatpush2.msra.mxu0 0.0
    %245 = vmatprep.subr.mxu0 0.0
    %246 = vmatpush2.msra.mxu0 0.0
    %247 = vmatprep.subr.mxu0 0.0
    %248 = vmatpush2.msra.mxu0 0.0
    %249 = vmatprep.mubr.f32.mxu0 0.0
    %250 = vmatmul.mubr.f32.gmra.mxu0 %v168
    %v251 = vpop.f32.mrf.mxu0
    %v252 = vadd.f32 0.0, %v251
    %v253 = vpop.f32.mrf.mxu0
    %254 = vdwg.mxu0
    %v255 = vld [vmem:[#allocation7 + $0x1] sm:$0x1]
    %v256 = vld [vmem:[#allocation7 + $0x7] sm:$0x1]
    %v257 = vrot.slane %v252, 4
    %v258 = vadd.f32 %v252, %v257
    %v259 = vrot.slane %v258, 2
    %v260 = vadd.f32 %v258, %v259
    %v261 = vrot.slane %v260, 1
    %v262 = vadd.f32 %v260, %v261
    %v263 = vmul.f32 %v262, %v144
    %v264 = vsub.f32 %v252, %v263
    %v265 = vmul.f32 %v264, %v264
    %v266 = vrot.slane %v265, 4
    %v267 = vadd.f32 %v265, %v266
    %v268 = vrot.slane %v267, 2
    %v269 = vadd.f32 %v267, %v268
    %v270 = vrot.slane %v269, 1
    %v271 = vadd.f32 %v269, %v270
    %v272 = vmul.f32 %v271, %v144
    %v273 = vadd.f32 %v272, 1e-05
    %v274 = vrsqrt.pop %v273
    %v275 = vmul.f32 %v255, %v274
    %v276 = vlaneseq
    %v277 = vshrl.u32 %v276, 7
    %v278 = vsub.s32 0, %v277
    %v279 = vrot.slane %v275, %v278
    %v280 = vmul.f32 %v264, %v279
    %v281 = vlaneseq
    %v282 = vshrl.u32 %v281, 7
    %v283 = vsub.s32 0, %v282
    %v284 = vrot.slane %v256, %v283
    %v285 = vadd.f32 %v280, %v284
    %v286 = vmax.f32 %v285, 0.0
    %v287 = vld [vmem:[#allocation5 + $0xa0] sm:$0xff]
    %v288 = vld [vmem:[#allocation5 + $0xa8] sm:$0xff]
    %v289 = vld [vmem:[#allocation5 + $0xb0] sm:$0xff]
    %v290 = vld [vmem:[#allocation5 + $0xb8] sm:$0xff]
    %v291 = vld [vmem:[#allocation5 + $0xc0] sm:$0xff]
    %v292 = vld [vmem:[#allocation5 + $0xc8] sm:$0xff]
    %v293 = vld [vmem:[#allocation5 + $0xd0] sm:$0xff]
    %v294 = vld [vmem:[#allocation5 + $0xd8] sm:$0xff]
    %v295 = vld [vmem:[#allocation5 + $0xe0] sm:$0xff]
    %v296 = vld [vmem:[#allocation5 + $0xe8] sm:$0xff]
    %v297 = vld [vmem:[#allocation5 + $0xf0] sm:$0xff]
    %v298 = vld [vmem:[#allocation5 + $0xf8] sm:$0xff]
    %v299 = vld [vmem:[#allocation5 + $0x100] sm:$0xff]
    %v300 = vld [vmem:[#allocation5 + $0x108] sm:$0xff]
    %v301 = vld [vmem:[#allocation5 + $0x110] sm:$0xff]
    %v302 = vld [vmem:[#allocation5 + $0x118] sm:$0xff]
    %303 = vmatprep.subr.mxu0 0.0
    %304 = vmatpush1.msra.mxu0 %v302
    %305 = vmatprep.subr.mxu0 0.0
    %306 = vmatpush1.msra.mxu0 %v301
    %307 = vmatprep.subr.mxu0 0.0
    %308 = vmatpush1.msra.mxu0 %v300
    %309 = vmatprep.subr.mxu0 0.0
    %310 = vmatpush1.msra.mxu0 %v299
    %311 = vmatprep.subr.mxu0 0.0
    %312 = vmatpush1.msra.mxu0 %v298
    %313 = vmatprep.subr.mxu0 0.0
    %314 = vmatpush1.msra.mxu0 %v297
    %315 = vmatprep.subr.mxu0 0.0
    %316 = vmatpush1.msra.mxu0 %v296
    %317 = vmatprep.subr.mxu0 0.0
    %318 = vmatpush1.msra.mxu0 %v295
    %319 = vmatprep.subr.mxu0 0.0
    %320 = vmatpush1.msra.mxu0 %v294
    %321 = vmatprep.subr.mxu0 0.0
    %322 = vmatpush1.msra.mxu0 %v293
    %323 = vmatprep.subr.mxu0 0.0
    %324 = vmatpush1.msra.mxu0 %v292
    %325 = vmatprep.subr.mxu0 0.0
    %326 = vmatpush1.msra.mxu0 %v291
    %327 = vmatprep.subr.mxu0 0.0
    %328 = vmatpush1.msra.mxu0 %v290
    %329 = vmatprep.subr.mxu0 0.0
    %330 = vmatpush1.msra.mxu0 %v289
    %331 = vmatprep.subr.mxu0 0.0
    %332 = vmatpush1.msra.mxu0 %v288
    %333 = vmatprep.subr.mxu0 0.0
    %334 = vmatpush1.msra.mxu0 %v287
    %335 = vmatprep.subr.mxu0 0.0
    %336 = vmatpush2.msra.mxu0 0.0
    %337 = vmatprep.subr.mxu0 0.0
    %338 = vmatpush2.msra.mxu0 0.0
    %339 = vmatprep.subr.mxu0 0.0
    %340 = vmatpush2.msra.mxu0 0.0
    %341 = vmatprep.subr.mxu0 0.0
    %342 = vmatpush2.msra.mxu0 0.0
    %343 = vmatprep.subr.mxu0 0.0
    %344 = vmatpush2.msra.mxu0 0.0
    %345 = vmatprep.subr.mxu0 0.0
    %346 = vmatpush2.msra.mxu0 0.0
    %347 = vmatprep.subr.mxu0 0.0
    %348 = vmatpush2.msra.mxu0 0.0
    %349 = vmatprep.subr.mxu0 0.0
    %350 = vmatpush2.msra.mxu0 0.0
    %351 = vmatprep.subr.mxu0 0.0
    %352 = vmatpush2.msra.mxu0 0.0
    %353 = vmatprep.subr.mxu0 0.0
    %354 = vmatpush2.msra.mxu0 0.0
    %355 = vmatprep.subr.mxu0 0.0
    %356 = vmatpush2.msra.mxu0 0.0
    %357 = vmatprep.subr.mxu0 0.0
    %358 = vmatpush2.msra.mxu0 0.0
    %359 = vmatprep.subr.mxu0 0.0
    %360 = vmatpush2.msra.mxu0 0.0
    %361 = vmatprep.subr.mxu0 0.0
    %362 = vmatpush2.msra.mxu0 0.0
    %363 = vmatprep.subr.mxu0 0.0
    %364 = vmatpush2.msra.mxu0 0.0
    %365 = vmatprep.subr.mxu0 0.0
    %366 = vmatpush2.msra.mxu0 0.0
    %367 = vmatprep.mubr.f32.mxu0 0.0
    %368 = vmatmul.mubr.f32.gmra.mxu0 %v168
    %v369 = vpop.f32.mrf.mxu0
    %v370 = vadd.f32 0.0, %v369
    %v371 = vpop.f32.mrf.mxu0
    %372 = vdwg.mxu0
    %v373 = vld [vmem:[#allocation7 + $0x2] sm:$0x1]
    %v374 = vld [vmem:[#allocation7 + $0x8] sm:$0x1]
    %v375 = vrot.slane %v370, 4
    %v376 = vadd.f32 %v370, %v375
    %v377 = vrot.slane %v376, 2
    %v378 = vadd.f32 %v376, %v377
    %v379 = vrot.slane %v378, 1
    %v380 = vadd.f32 %v378, %v379
    %v381 = vmul.f32 %v380, %v144
    %v382 = vsub.f32 %v370, %v381
    %v383 = vmul.f32 %v382, %v382
    %v384 = vrot.slane %v383, 4
    %v385 = vadd.f32 %v383, %v384
    %v386 = vrot.slane %v385, 2
    %v387 = vadd.f32 %v385, %v386
    %v388 = vrot.slane %v387, 1
    %v389 = vadd.f32 %v387, %v388
    %v390 = vmul.f32 %v389, %v144
    %v391 = vadd.f32 %v390, 1e-05
    %v392 = vrsqrt.pop %v391
    %v393 = vmul.f32 %v373, %v392
    %v394 = vlaneseq
    %v395 = vshrl.u32 %v394, 7
    %v396 = vsub.s32 0, %v395
    %v397 = vrot.slane %v393, %v396
    %v398 = vmul.f32 %v382, %v397
    %v399 = vlaneseq
    %v400 = vshrl.u32 %v399, 7
    %v401 = vsub.s32 0, %v400
    %v402 = vrot.slane %v374, %v401
    %v403 = vadd.f32 %v398, %v402
    %v404 = vmax.f32 %v403, 0.0
    %v405 = vld [vmem:[#allocation5 + $0x120] sm:$0xff]
    %v406 = vld [vmem:[#allocation5 + $0x128] sm:$0xff]
    %v407 = vld [vmem:[#allocation5 + $0x130] sm:$0xff]
    %v408 = vld [vmem:[#allocation5 + $0x138] sm:$0xff]
    %v409 = vld [vmem:[#allocation5 + $0x140] sm:$0xff]
    %v410 = vld [vmem:[#allocation5 + $0x148] sm:$0xff]
    %v411 = vld [vmem:[#allocation5 + $0x150] sm:$0xff]
    %v412 = vld [vmem:[#allocation5 + $0x158] sm:$0xff]
    %v413 = vld [vmem:[#allocation5 + $0x160] sm:$0xff]
    %v414 = vld [vmem:[#allocation5 + $0x168] sm:$0xff]
    %v415 = vld [vmem:[#allocation5 + $0x170] sm:$0xff]
    %v416 = vld [vmem:[#allocation5 + $0x178] sm:$0xff]
    %v417 = vld [vmem:[#allocation5 + $0x180] sm:$0xff]
    %v418 = vld [vmem:[#allocation5 + $0x188] sm:$0xff]
    %v419 = vld [vmem:[#allocation5 + $0x190] sm:$0xff]
    %v420 = vld [vmem:[#allocation5 + $0x198] sm:$0xff]
    %v421 = vld [vmem:[#allocation5 + $0x1a0] sm:$0xff]
    %v422 = vld [vmem:[#allocation5 + $0x1a8] sm:$0xff]
    %v423 = vld [vmem:[#allocation5 + $0x1b0] sm:$0xff]
    %v424 = vld [vmem:[#allocation5 + $0x1b8] sm:$0xff]
    %v425 = vld [vmem:[#allocation5 + $0x1c0] sm:$0xff]
    %v426 = vld [vmem:[#allocation5 + $0x1c8] sm:$0xff]
    %v427 = vld [vmem:[#allocation5 + $0x1d0] sm:$0xff]
    %v428 = vld [vmem:[#allocation5 + $0x1d8] sm:$0xff]
    %v429 = vld [vmem:[#allocation5 + $0x1e0] sm:$0xff]
    %v430 = vld [vmem:[#allocation5 + $0x1e8] sm:$0xff]
    %v431 = vld [vmem:[#allocation5 + $0x1f0] sm:$0xff]
    %v432 = vld [vmem:[#allocation5 + $0x1f8] sm:$0xff]
    %v433 = vld [vmem:[#allocation5 + $0x200] sm:$0xff]
    %v434 = vld [vmem:[#allocation5 + $0x208] sm:$0xff]
    %v435 = vld [vmem:[#allocation5 + $0x210] sm:$0xff]
    %v436 = vld [vmem:[#allocation5 + $0x218] sm:$0xff]
    %437 = vmatprep.subr.mxu0 0.0
    %438 = vmatpush1.msra.mxu0 %v436
    %439 = vmatprep.subr.mxu0 0.0
    %440 = vmatpush1.msra.mxu0 %v435
    %441 = vmatprep.subr.mxu0 0.0
    %442 = vmatpush1.msra.mxu0 %v434
    %443 = vmatprep.subr.mxu0 0.0
    %444 = vmatpush1.msra.mxu0 %v433
    %445 = vmatprep.subr.mxu0 0.0
    %446 = vmatpush1.msra.mxu0 %v432
    %447 = vmatprep.subr.mxu0 0.0
    %448 = vmatpush1.msra.mxu0 %v431
    %449 = vmatprep.subr.mxu0 0.0
    %450 = vmatpush1.msra.mxu0 %v430
    %451 = vmatprep.subr.mxu0 0.0
    %452 = vmatpush1.msra.mxu0 %v429
    %453 = vmatprep.subr.mxu0 0.0
    %454 = vmatpush1.msra.mxu0 %v428
    %455 = vmatprep.subr.mxu0 0.0
    %456 = vmatpush1.msra.mxu0 %v427
    %457 = vmatprep.subr.mxu0 0.0
    %458 = vmatpush1.msra.mxu0 %v426
    %459 = vmatprep.subr.mxu0 0.0
    %460 = vmatpush1.msra.mxu0 %v425
    %461 = vmatprep.subr.mxu0 0.0
    %462 = vmatpush1.msra.mxu0 %v424
    %463 = vmatprep.subr.mxu0 0.0
    %464 = vmatpush1.msra.mxu0 %v423
    %465 = vmatprep.subr.mxu0 0.0
    %466 = vmatpush1.msra.mxu0 %v422
    %467 = vmatprep.subr.mxu0 0.0
    %468 = vmatpush1.msra.mxu0 %v421
    %469 = vmatprep.subr.mxu0 0.0
    %470 = vmatpush2.msra.mxu0 0.0
    %471 = vmatprep.subr.mxu0 0.0
    %472 = vmatpush2.msra.mxu0 0.0
    %473 = vmatprep.subr.mxu0 0.0
    %474 = vmatpush2.msra.mxu0 0.0
    %475 = vmatprep.subr.mxu0 0.0
    %476 = vmatpush2.msra.mxu0 0.0
    %477 = vmatprep.subr.mxu0 0.0
    %478 = vmatpush2.msra.mxu0 0.0
    %479 = vmatprep.subr.mxu0 0.0
    %480 = vmatpush2.msra.mxu0 0.0
    %481 = vmatprep.subr.mxu0 0.0
    %482 = vmatpush2.msra.mxu0 0.0
    %483 = vmatprep.subr.mxu0 0.0
    %484 = vmatpush2.msra.mxu0 0.0
    %485 = vmatprep.subr.mxu0 0.0
    %486 = vmatpush2.msra.mxu0 0.0
    %487 = vmatprep.subr.mxu0 0.0
    %488 = vmatpush2.msra.mxu0 0.0
    %489 = vmatprep.subr.mxu0 0.0
    %490 = vmatpush2.msra.mxu0 0.0
    %491 = vmatprep.subr.mxu0 0.0
    %492 = vmatpush2.msra.mxu0 0.0
    %493 = vmatprep.subr.mxu0 0.0
    %494 = vmatpush2.msra.mxu0 0.0
    %495 = vmatprep.subr.mxu0 0.0
    %496 = vmatpush2.msra.mxu0 0.0
    %497 = vmatprep.subr.mxu0 0.0
    %498 = vmatpush2.msra.mxu0 0.0
    %499 = vmatprep.subr.mxu0 0.0
    %500 = vmatpush2.msra.mxu0 0.0
    %501 = vmatprep.mubr.f32.mxu0 0.0
    %502 = vmatmul.mubr.f32.gmra.mxu0 %v404
    %v503 = vpop.f32.mrf.mxu0
    %v504 = vadd.f32 0.0, %v503
    %v505 = vpop.f32.mrf.mxu0
    %506 = vdwg.mxu0
    %507 = vmatprep.subr.mxu0 0.0
    %508 = vmatpush1.msra.mxu0 %v420
    %509 = vmatprep.subr.mxu0 0.0
    %510 = vmatpush1.msra.mxu0 %v419
    %511 = vmatprep.subr.mxu0 0.0
    %512 = vmatpush1.msra.mxu0 %v418
    %513 = vmatprep.subr.mxu0 0.0
    %514 = vmatpush1.msra.mxu0 %v417
    %515 = vmatprep.subr.mxu0 0.0
    %516 = vmatpush1.msra.mxu0 %v416
    %517 = vmatprep.subr.mxu0 0.0
    %518 = vmatpush1.msra.mxu0 %v415
    %519 = vmatprep.subr.mxu0 0.0
    %520 = vmatpush1.msra.mxu0 %v414
    %521 = vmatprep.subr.mxu0 0.0
    %522 = vmatpush1.msra.mxu0 %v413
    %523 = vmatprep.subr.mxu0 0.0
    %524 = vmatpush1.msra.mxu0 %v412
    %525 = vmatprep.subr.mxu0 0.0
    %526 = vmatpush1.msra.mxu0 %v411
    %527 = vmatprep.subr.mxu0 0.0
    %528 = vmatpush1.msra.mxu0 %v410
    %529 = vmatprep.subr.mxu0 0.0
    %530 = vmatpush1.msra.mxu0 %v409
    %531 = vmatprep.subr.mxu0 0.0
    %532 = vmatpush1.msra.mxu0 %v408
    %533 = vmatprep.subr.mxu0 0.0
    %534 = vmatpush1.msra.mxu0 %v407
    %535 = vmatprep.subr.mxu0 0.0
    %536 = vmatpush1.msra.mxu0 %v406
    %537 = vmatprep.subr.mxu0 0.0
    %538 = vmatpush1.msra.mxu0 %v405
    %539 = vmatprep.subr.mxu0 0.0
    %540 = vmatpush2.msra.mxu0 0.0
    %541 = vmatprep.subr.mxu0 0.0
    %542 = vmatpush2.msra.mxu0 0.0
    %543 = vmatprep.subr.mxu0 0.0
    %544 = vmatpush2.msra.mxu0 0.0
    %545 = vmatprep.subr.mxu0 0.0
    %546 = vmatpush2.msra.mxu0 0.0
    %547 = vmatprep.subr.mxu0 0.0
    %548 = vmatpush2.msra.mxu0 0.0
    %549 = vmatprep.subr.mxu0 0.0
    %550 = vmatpush2.msra.mxu0 0.0
    %551 = vmatprep.subr.mxu0 0.0
    %552 = vmatpush2.msra.mxu0 0.0
    %553 = vmatprep.subr.mxu0 0.0
    %554 = vmatpush2.msra.mxu0 0.0
    %555 = vmatprep.subr.mxu0 0.0
    %556 = vmatpush2.msra.mxu0 0.0
    %557 = vmatprep.subr.mxu0 0.0
    %558 = vmatpush2.msra.mxu0 0.0
    %559 = vmatprep.subr.mxu0 0.0
    %560 = vmatpush2.msra.mxu0 0.0
    %561 = vmatprep.subr.mxu0 0.0
    %562 = vmatpush2.msra.mxu0 0.0
    %563 = vmatprep.subr.mxu0 0.0
    %564 = vmatpush2.msra.mxu0 0.0
    %565 = vmatprep.subr.mxu0 0.0
    %566 = vmatpush2.msra.mxu0 0.0
    %567 = vmatprep.subr.mxu0 0.0
    %568 = vmatpush2.msra.mxu0 0.0
    %569 = vmatprep.subr.mxu0 0.0
    %570 = vmatpush2.msra.mxu0 0.0
    %571 = vmatprep.mubr.f32.mxu0 0.0
    %572 = vmatmul.mubr.f32.gmra.mxu0 %v286
    %v573 = vpop.f32.mrf.mxu0
    %v574 = vadd.f32 %v504, %v573
    %v575 = vpop.f32.mrf.mxu0
    %576 = vdwg.mxu0
    %v577 = vld [vmem:[#allocation7 + $0x3] sm:$0x1]
    %v578 = vld [vmem:[#allocation7 + $0x9] sm:$0x1]
    %v579 = vrot.slane %v574, 4
    %v580 = vadd.f32 %v574, %v579
    %v581 = vrot.slane %v580, 2
    %v582 = vadd.f32 %v580, %v581
    %v583 = vrot.slane %v582, 1
    %v584 = vadd.f32 %v582, %v583
    %v585 = vmul.f32 %v584, %v144
    %v586 = vsub.f32 %v574, %v585
    %v587 = vmul.f32 %v586, %v586
    %v588 = vrot.slane %v587, 4
    %v589 = vadd.f32 %v587, %v588
    %v590 = vrot.slane %v589, 2
    %v591 = vadd.f32 %v589, %v590
    %v592 = vrot.slane %v591, 1
    %v593 = vadd.f32 %v591, %v592
    %v594 = vmul.f32 %v593, %v144
    %v595 = vadd.f32 %v594, 1e-05
    %v596 = vrsqrt.pop %v595
    %v597 = vmul.f32 %v577, %v596
    %v598 = vlaneseq
    %v599 = vshrl.u32 %v598, 7
    %v600 = vsub.s32 0, %v599
    %v601 = vrot.slane %v597, %v600
    %v602 = vmul.f32 %v586, %v601
    %v603 = vlaneseq
    %v604 = vshrl.u32 %v603, 7
    %v605 = vsub.s32 0, %v604
    %v606 = vrot.slane %v578, %v605
    %v607 = vadd.f32 %v602, %v606
    %v608 = vmax.f32 %v607, 0.0
    %v609 = vld [vmem:[#allocation5 + $0x220] sm:$0xff]
    %v610 = vld [vmem:[#allocation5 + $0x228] sm:$0xff]
    %v611 = vld [vmem:[#allocation5 + $0x230] sm:$0xff]
    %v612 = vld [vmem:[#allocation5 + $0x238] sm:$0xff]
    %v613 = vld [vmem:[#allocation5 + $0x240] sm:$0xff]
    %v614 = vld [vmem:[#allocation5 + $0x248] sm:$0xff]
    %v615 = vld [vmem:[#allocation5 + $0x250] sm:$0xff]
    %v616 = vld [vmem:[#allocation5 + $0x258] sm:$0xff]
    %v617 = vld [vmem:[#allocation5 + $0x260] sm:$0xff]
    %v618 = vld [vmem:[#allocation5 + $0x268] sm:$0xff]
    %v619 = vld [vmem:[#allocation5 + $0x270] sm:$0xff]
    %v620 = vld [vmem:[#allocation5 + $0x278] sm:$0xff]
    %v621 = vld [vmem:[#allocation5 + $0x280] sm:$0xff]
    %v622 = vld [vmem:[#allocation5 + $0x288] sm:$0xff]
    %v623 = vld [vmem:[#allocation5 + $0x290] sm:$0xff]
    %v624 = vld [vmem:[#allocation5 + $0x298] sm:$0xff]
    %625 = vmatprep.subr.mxu0 0.0
    %626 = vmatpush1.msra.mxu0 %v624
    %627 = vmatprep.subr.mxu0 0.0
    %628 = vmatpush1.msra.mxu0 %v623
    %629 = vmatprep.subr.mxu0 0.0
    %630 = vmatpush1.msra.mxu0 %v622
    %631 = vmatprep.subr.mxu0 0.0
    %632 = vmatpush1.msra.mxu0 %v621
    %633 = vmatprep.subr.mxu0 0.0
    %634 = vmatpush1.msra.mxu0 %v620
    %635 = vmatprep.subr.mxu0 0.0
    %636 = vmatpush1.msra.mxu0 %v619
    %637 = vmatprep.subr.mxu0 0.0
    %638 = vmatpush1.msra.mxu0 %v618
    %639 = vmatprep.subr.mxu0 0.0
    %640 = vmatpush1.msra.mxu0 %v617
    %641 = vmatprep.subr.mxu0 0.0
    %642 = vmatpush1.msra.mxu0 %v616
    %643 = vmatprep.subr.mxu0 0.0
    %644 = vmatpush1.msra.mxu0 %v615
    %645 = vmatprep.subr.mxu0 0.0
    %646 = vmatpush1.msra.mxu0 %v614
    %647 = vmatprep.subr.mxu0 0.0
    %648 = vmatpush1.msra.mxu0 %v613
    %649 = vmatprep.subr.mxu0 0.0
    %650 = vmatpush1.msra.mxu0 %v612
    %651 = vmatprep.subr.mxu0 0.0
    %652 = vmatpush1.msra.mxu0 %v611
    %653 = vmatprep.subr.mxu0 0.0
    %654 = vmatpush1.msra.mxu0 %v610
    %655 = vmatprep.subr.mxu0 0.0
    %656 = vmatpush1.msra.mxu0 %v609
    %657 = vmatprep.subr.mxu0 0.0
    %658 = vmatpush2.msra.mxu0 0.0
    %659 = vmatprep.subr.mxu0 0.0
    %660 = vmatpush2.msra.mxu0 0.0
    %661 = vmatprep.subr.mxu0 0.0
    %662 = vmatpush2.msra.mxu0 0.0
    %663 = vmatprep.subr.mxu0 0.0
    %664 = vmatpush2.msra.mxu0 0.0
    %665 = vmatprep.subr.mxu0 0.0
    %666 = vmatpush2.msra.mxu0 0.0
    %667 = vmatprep.subr.mxu0 0.0
    %668 = vmatpush2.msra.mxu0 0.0
    %669 = vmatprep.subr.mxu0 0.0
    %670 = vmatpush2.msra.mxu0 0.0
    %671 = vmatprep.subr.mxu0 0.0
    %672 = vmatpush2.msra.mxu0 0.0
    %673 = vmatprep.subr.mxu0 0.0
    %674 = vmatpush2.msra.mxu0 0.0
    %675 = vmatprep.subr.mxu0 0.0
    %676 = vmatpush2.msra.mxu0 0.0
    %677 = vmatprep.subr.mxu0 0.0
    %678 = vmatpush2.msra.mxu0 0.0
    %679 = vmatprep.subr.mxu0 0.0
    %680 = vmatpush2.msra.mxu0 0.0
    %681 = vmatprep.subr.mxu0 0.0
    %682 = vmatpush2.msra.mxu0 0.0
    %683 = vmatprep.subr.mxu0 0.0
    %684 = vmatpush2.msra.mxu0 0.0
    %685 = vmatprep.subr.mxu0 0.0
    %686 = vmatpush2.msra.mxu0 0.0
    %687 = vmatprep.subr.mxu0 0.0
    %688 = vmatpush2.msra.mxu0 0.0
    %689 = vmatprep.mubr.f32.mxu0 0.0
    %690 = vmatmul.mubr.f32.gmra.mxu0 %v608
    %v691 = vpop.f32.mrf.mxu0
    %v692 = vadd.f32 0.0, %v691
    %v693 = vpop.f32.mrf.mxu0
    %694 = vdwg.mxu0
    %v695 = vld [vmem:[#allocation7 + $0x4] sm:$0x1]
    %v696 = vld [vmem:[#allocation7 + $0xa] sm:$0x1]
    %vm697 = vcmask 523264
    %v698 = vsel %vm697, %v692, 0.0
    %v699 = vrot.slane %v698, 4
    %v700 = vadd.f32 %v698, %v699
    %v701 = vrot.slane %v700, 2
    %v702 = vadd.f32 %v700, %v701
    %v703 = vrot.slane %v702, 1
    %v704 = vadd.f32 %v702, %v703
    %v705 = vmul.f32 %v704, %v144
    %v706 = vsub.f32 %v692, %v705
    %v707 = vmul.f32 %v706, %v706
    %v708 = vsel %vm697, %v707, 0.0
    %v709 = vrot.slane %v708, 4
    %v710 = vadd.f32 %v708, %v709
    %v711 = vrot.slane %v710, 2
    %v712 = vadd.f32 %v710, %v711
    %v713 = vrot.slane %v712, 1
    %v714 = vadd.f32 %v712, %v713
    %v715 = vmul.f32 %v714, %v144
    %v716 = vadd.f32 %v715, 1e-05
    %v717 = vrsqrt.pop %v716
    %v718 = vmul.f32 %v695, %v717
    %v719 = vlaneseq
    %v720 = vshrl.u32 %v719, 7
    %v721 = vsub.s32 0, %v720
    %v722 = vrot.slane %v718, %v721
    %v723 = vmul.f32 %v706, %v722
    %v724 = vlaneseq
    %v725 = vshrl.u32 %v724, 7
    %v726 = vsub.s32 0, %v725
    %v727 = vrot.slane %v696, %v726
    %v728 = vadd.f32 %v723, %v727
    %v729 = vmax.f32 %v728, 0.0
    %v730 = vld [vmem:[#allocation5 + $0x2a0] sm:$0xff]
    %v731 = vld [vmem:[#allocation5 + $0x2a8] sm:$0xff]
    %v732 = vld [vmem:[#allocation5 + $0x2b0] sm:$0xff]
    %v733 = vld [vmem:[#allocation5 + $0x2b8] sm:$0xff]
    %v734 = vld [vmem:[#allocation5 + $0x2c0] sm:$0xff]
    %v735 = vld [vmem:[#allocation5 + $0x2c8] sm:$0xff]
    %v736 = vld [vmem:[#allocation5 + $0x2d0] sm:$0xff]
    %v737 = vld [vmem:[#allocation5 + $0x2d8] sm:$0xff]
    %v739 = vsel %vm697, %v729, 0
    %741 = vmatprep.subr.mxu0 0.0
    %742 = vmatpush1.msra.mxu0 0.0
    %743 = vmatprep.subr.mxu0 0.0
    %744 = vmatpush1.msra.mxu0 0.0
    %745 = vmatprep.subr.mxu0 0.0
    %746 = vmatpush1.msra.mxu0 0.0
    %747 = vmatprep.subr.mxu0 0.0
    %748 = vmatpush1.msra.mxu0 0.0
    %749 = vmatprep.subr.mxu0 0.0
    %750 = vmatpush1.msra.mxu0 0.0
    %751 = vmatprep.subr.mxu0 0.0
    %752 = vmatpush1.msra.mxu0 0.0
    %753 = vmatprep.subr.mxu0 0.0
    %754 = vmatpush1.msra.mxu0 0.0
    %755 = vmatprep.subr.mxu0 0.0
    %756 = vmatpush1.msra.mxu0 0.0
    %757 = vmatprep.subr.mxu0 0.0
    %758 = vmatpush1.msra.mxu0 %v737
    %759 = vmatprep.subr.mxu0 0.0
    %760 = vmatpush1.msra.mxu0 %v736
    %761 = vmatprep.subr.mxu0 0.0
    %762 = vmatpush1.msra.mxu0 %v735
    %763 = vmatprep.subr.mxu0 0.0
    %764 = vmatpush1.msra.mxu0 %v734
    %765 = vmatprep.subr.mxu0 0.0
    %766 = vmatpush1.msra.mxu0 %v733
    %767 = vmatprep.subr.mxu0 0.0
    %768 = vmatpush1.msra.mxu0 %v732
    %769 = vmatprep.subr.mxu0 0.0
    %770 = vmatpush1.msra.mxu0 %v731
    %771 = vmatprep.subr.mxu0 0.0
    %772 = vmatpush1.msra.mxu0 %v730
    %773 = vmatprep.subr.mxu0 0.0
    %774 = vmatpush2.msra.mxu0 0.0
    %775 = vmatprep.subr.mxu0 0.0
    %776 = vmatpush2.msra.mxu0 0.0
    %777 = vmatprep.subr.mxu0 0.0
    %778 = vmatpush2.msra.mxu0 0.0
    %779 = vmatprep.subr.mxu0 0.0
    %780 = vmatpush2.msra.mxu0 0.0
    %781 = vmatprep.subr.mxu0 0.0
    %782 = vmatpush2.msra.mxu0 0.0
    %783 = vmatprep.subr.mxu0 0.0
    %784 = vmatpush2.msra.mxu0 0.0
    %785 = vmatprep.subr.mxu0 0.0
    %786 = vmatpush2.msra.mxu0 0.0
    %787 = vmatprep.subr.mxu0 0.0
    %788 = vmatpush2.msra.mxu0 0.0
    %789 = vmatprep.subr.mxu0 0.0
    %790 = vmatpush2.msra.mxu0 0.0
    %791 = vmatprep.subr.mxu0 0.0
    %792 = vmatpush2.msra.mxu0 0.0
    %793 = vmatprep.subr.mxu0 0.0
    %794 = vmatpush2.msra.mxu0 0.0
    %795 = vmatprep.subr.mxu0 0.0
    %796 = vmatpush2.msra.mxu0 0.0
    %797 = vmatprep.subr.mxu0 0.0
    %798 = vmatpush2.msra.mxu0 0.0
    %799 = vmatprep.subr.mxu0 0.0
    %800 = vmatpush2.msra.mxu0 0.0
    %801 = vmatprep.subr.mxu0 0.0
    %802 = vmatpush2.msra.mxu0 0.0
    %803 = vmatprep.subr.mxu0 0.0
    %804 = vmatpush2.msra.mxu0 0.0
    %805 = vmatprep.mubr.f32.mxu0 0.0
    %806 = vmatmul.mubr.f32.gmra.mxu0 %v739
    %v807 = vpop.f32.mrf.mxu0
    %v808 = vadd.f32 0.0, %v807
    %v809 = vpop.f32.mrf.mxu0
    %810 = vdwg.mxu0
    %v811 = vld [vmem:[#allocation7 + $0x5] sm:$0x1]
    %v812 = vld [vmem:[#allocation7 + $0xb] sm:$0x1]
    %vm813 = vcmask 261120
    %v814 = vsel %vm813, %v808, 0.0
    %v815 = vrot.slane %v814, 4
    %v816 = vadd.f32 %v814, %v815
    %v817 = vrot.slane %v816, 2
    %v818 = vadd.f32 %v816, %v817
    %v819 = vrot.slane %v818, 1
    %v820 = vadd.f32 %v818, %v819
    %v821 = vmul.f32 %v820, %v144
    %v822 = vsub.f32 %v808, %v821
    %v823 = vmul.f32 %v822, %v822
    %v824 = vsel %vm813, %v823, 0.0
    %v825 = vrot.slane %v824, 4
    %v826 = vadd.f32 %v824, %v825
    %v827 = vrot.slane %v826, 2
    %v828 = vadd.f32 %v826, %v827
    %v829 = vrot.slane %v828, 1
    %v830 = vadd.f32 %v828, %v829
    %v831 = vmul.f32 %v830, %v144
    %v832 = vadd.f32 %v831, 1e-05
    %v833 = vrsqrt.pop %v832
    %v834 = vmul.f32 %v811, %v833
    %v835 = vlaneseq
    %v836 = vshrl.u32 %v835, 7
    %v837 = vsub.s32 0, %v836
    %v838 = vrot.slane %v834, %v837
    %v839 = vmul.f32 %v822, %v838
    %v840 = vlaneseq
    %v841 = vshrl.u32 %v840, 7
    %v842 = vsub.s32 0, %v841
    %v843 = vrot.slane %v812, %v842
    %v844 = vadd.f32 %v839, %v843
    %v845 = vmax.f32 %v844, 0.0
    %v846 = vld [vmem:[#allocation7 + $0xc] sm:$0x1]
    %v847 = vld [vmem:[#allocation5 + $0x2e0] sm:$0xff]
    %v848 = vld [vmem:[#allocation5 + $0x2e8] sm:$0xff]
    %v849 = vld [vmem:[#allocation5 + $0x2f0] sm:$0xff]
    %v850 = vld [vmem:[#allocation5 + $0x2f8] sm:$0xff]
    %v851 = vlaneseq
    %v852 = vshrl.u32 %v851, 7
    %v853 = vsub.s32 0, %v852
    %v854 = vrot.slane %v846, %v853
    %v856 = vsel %vm813, %v845, 0
    %858 = vmatprep.subr.mxu0 0.0
    %859 = vmatpush1.msra.mxu0 0.0
    %860 = vmatprep.subr.mxu0 0.0
    %861 = vmatpush1.msra.mxu0 0.0
    %862 = vmatprep.subr.mxu0 0.0
    %863 = vmatpush1.msra.mxu0 0.0
    %864 = vmatprep.subr.mxu0 0.0
    %865 = vmatpush1.msra.mxu0 0.0
    %866 = vmatprep.subr.mxu0 0.0
    %867 = vmatpush1.msra.mxu0 0.0
    %868 = vmatprep.subr.mxu0 0.0
    %869 = vmatpush1.msra.mxu0 0.0
    %870 = vmatprep.subr.mxu0 0.0
    %871 = vmatpush1.msra.mxu0 0.0
    %872 = vmatprep.subr.mxu0 0.0
    %873 = vmatpush1.msra.mxu0 0.0
    %874 = vmatprep.subr.mxu0 0.0
    %875 = vmatpush1.msra.mxu0 0.0
    %876 = vmatprep.subr.mxu0 0.0
    %877 = vmatpush1.msra.mxu0 0.0
    %878 = vmatprep.subr.mxu0 0.0
    %879 = vmatpush1.msra.mxu0 0.0
    %880 = vmatprep.subr.mxu0 0.0
    %881 = vmatpush1.msra.mxu0 0.0
    %882 = vmatprep.subr.mxu0 0.0
    %883 = vmatpush1.msra.mxu0 %v850
    %884 = vmatprep.subr.mxu0 0.0
    %885 = vmatpush1.msra.mxu0 %v849
    %886 = vmatprep.subr.mxu0 0.0
    %887 = vmatpush1.msra.mxu0 %v848
    %888 = vmatprep.subr.mxu0 0.0
    %889 = vmatpush1.msra.mxu0 %v847
    %890 = vmatprep.subr.mxu0 0.0
    %891 = vmatpush2.msra.mxu0 0.0
    %892 = vmatprep.subr.mxu0 0.0
    %893 = vmatpush2.msra.mxu0 0.0
    %894 = vmatprep.subr.mxu0 0.0
    %895 = vmatpush2.msra.mxu0 0.0
    %896 = vmatprep.subr.mxu0 0.0
    %897 = vmatpush2.msra.mxu0 0.0
    %898 = vmatprep.subr.mxu0 0.0
    %899 = vmatpush2.msra.mxu0 0.0
    %900 = vmatprep.subr.mxu0 0.0
    %901 = vmatpush2.msra.mxu0 0.0
    %902 = vmatprep.subr.mxu0 0.0
    %903 = vmatpush2.msra.mxu0 0.0
    %904 = vmatprep.subr.mxu0 0.0
    %905 = vmatpush2.msra.mxu0 0.0
    %906 = vmatprep.subr.mxu0 0.0
    %907 = vmatpush2.msra.mxu0 0.0
    %908 = vmatprep.subr.mxu0 0.0
    %909 = vmatpush2.msra.mxu0 0.0
    %910 = vmatprep.subr.mxu0 0.0
    %911 = vmatpush2.msra.mxu0 0.0
    %912 = vmatprep.subr.mxu0 0.0
    %913 = vmatpush2.msra.mxu0 0.0
    %914 = vmatprep.subr.mxu0 0.0
    %915 = vmatpush2.msra.mxu0 0.0
    %916 = vmatprep.subr.mxu0 0.0
    %917 = vmatpush2.msra.mxu0 0.0
    %918 = vmatprep.subr.mxu0 0.0
    %919 = vmatpush2.msra.mxu0 0.0
    %920 = vmatprep.subr.mxu0 0.0
    %921 = vmatpush2.msra.mxu0 0.0
    %922 = vmatprep.mubr.f32.mxu0 0.0
    %923 = vmatmul.mubr.f32.gmra.mxu0 %v856
    %v924 = vpop.f32.mrf.mxu0
    %v925 = vadd.f32 %v854, %v924
    %v926 = vpop.f32.mrf.mxu0
    %927 = vdwg.mxu0
    %928 = vst [vmem:[#allocation8] sm:$0xff] %v925
    // Predicated region
    $region26: #{classifier_net.1} parent=1 // pred_check
      _
    $region27: #{classifier_net.1} parent=1 // pred_check_branch
      %930 = sbr.rel (0) target = $region29
    $region28: #{classifier_net.1} parent=1 // pred_region
      %s932 = ssub.s32 128, 128
      %933 = vsyncadd [#allocation4], %s932
      %s935 = sshll.u32 [#allocation8], 4
      %s936 = int_to_ptr.vmem [resolvable:$true] %s935
      %938 = dma.vmem_to_hbm [thread:$0]  %s936, 128, %s3, [#allocation4]
    $region29: #{classifier_net.1} parent=1 // pred_fallthru
      _
    // Predicated region
    $region30: #{classifier_net.1} parent=1 // pred_check
      _
    $region31: #{classifier_net.1} parent=1 // pred_check_branch
      %940 = sbr.rel (0) target = $region33
    $region32: #{classifier_net.1} parent=1 // pred_region
      %941 = dma.done [#allocation4], 128
    $region33: #{classifier_net.1} parent=1 // pred_fallthru
      _
    %942 = vsyncpa [#allocation3], 1
    %943 = vsyncpa [#allocation6], 1
    %944 = vsyncpa [#allocation4], 1

</llo_original>
